<compile_context>
chip_gen: v6e
topology: v6e:2x2x1
jax: 0.10.0
libtpu: 0.0.40
codegen_flags: <defaults>
</compile_context>

<pallas_src>
import math
from functools import partial

import jax
import jax.numpy as jnp
from jax import lax
from jax.experimental import pallas as pl
from jax.experimental.pallas import tpu as pltpu


# ----------------------------------------------------------------------------
# Quintic (order-5) B-spline basis and dct2 ('reflect') folding
# ----------------------------------------------------------------------------
def _bspline5(t):
    x = jnp.abs(t)
    x2 = x * x
    x3 = x2 * x
    x4 = x2 * x2
    x5 = x4 * x
    p0 = (66.0 - 60.0 * x2 + 30.0 * x4 - 10.0 * x5) / 120.0
    p1 = (51.0 + 75.0 * x - 210.0 * x2 + 150.0 * x3 - 45.0 * x4 + 5.0 * x5) / 120.0
    p2 = (3.0 - x) ** 5 / 120.0
    return jnp.where(x < 1.0, p0, jnp.where(x < 2.0, p1, jnp.where(x < 3.0, p2, 0.0)))


def _fold_weights(g, idx, n):
    """Quintic B-spline weight of node `idx` at coordinate `g`, with dct2/'reflect'
    boundary folding over `n` nodes (full 6-term fold, used for spatial weights)."""
    w = None
    for k in (-1, 0, 1):
        off = 2.0 * float(n) * float(k)
        term = _bspline5(g - (idx + off)) + _bspline5(g - (-1.0 - idx + off))
        w = term if w is None else w + term
    return w


# ----------------------------------------------------------------------------
# Kernel 1: per-tile histogram -> clip/redistribute -> CDF   (output (n_bins, TR))
# ----------------------------------------------------------------------------
def _hist_cdf_kernel(bins_ref, cdf_ref, *, n_bins, vox, clip_limit):
    # bins_ref: (vox, TR) uint8 bin indices, precomputed and clipped in wrapper.
    idx = bins_ref[...].astype(jnp.int32)                        # (V, TR)

    # Lane-dense per-bin counting: no (V, TR, n_bins) one-hot intermediate.
    # The bin loop is unrolled (CLAHE n_bins is small, <= 256).
    counts = [
        jnp.sum((idx == b).astype(jnp.float32), axis=0, keepdims=True)
        for b in range(n_bins)
    ]                                                            # n_bins x (1, TR)

    # Total count per tile is exactly `vox` (indices are clipped in range), so
    # the histogram normalisation is a static scalar (== 1.0 after f32 rounding).
    norm = vox / (vox + 1e-10)
    histos = [c * norm for c in counts]

    if clip_limit > 0:
        limit = max(clip_limit * vox // n_bins, 1)               # static scalar
        s = None
        clipped_h = []
        for h in histos:                                         # clip + fold the sum
            hc = jnp.minimum(h, limit)
            clipped_h.append(hc)
            s = hc if s is None else s + hc
        histos = clipped_h
        clipped = vox - s                                        # (1, TR)
        residual = jnp.remainder(clipped, float(n_bins))
        redist = (clipped - residual) / n_bins
        histos = [
            h + redist + (float(b) < residual).astype(jnp.float32)
            for b, h in enumerate(histos)
        ]

    # Exact running cumulative sum over bins (counts are exact f32 integers).
    # Assemble the full (n_bins, TR) block and store it once — avoids n_bins
    # masked single-sublane stores (1 vst slot on v5e).
    scale = (n_bins - 1.0) / vox
    rows = []
    run = histos[0]
    rows.append(jnp.clip(run * scale, 0.0, n_bins - 1.0))
    for b in range(1, n_bins):
        run = run + histos[b]
        rows.append(jnp.clip(run * scale, 0.0, n_bins - 1.0))
    cdf_ref[...] = jnp.concatenate(rows, axis=0)


# ----------------------------------------------------------------------------
# Kernel 2: order-5 B-spline grid pull of the CDF volume at (bin, gh, gw)
#           batched over TBC channels and tiled over THW pixels per grid step
# ----------------------------------------------------------------------------
def _grid_pull_kernel(x_ref, cdf_ref, whw_ref, out_ref, *, n_bins, tbc):
    # x_ref   : (TBC, THW)            pixel values, assumed in [0, 1]
    # cdf_ref : (n_bins * TBC, GG)    CDF rows for this channel tile,
    #                                 bin-major / channel-minor (contiguous per bin)
    # whw_ref : (GG, THW)             combined spatial spline weights
    gb = x_ref[...] * (n_bins - 1.0)                       # (TBC, THW)

    # One MXU matmul contracts the tile-grid axis for all bins x channels.
    g2 = jnp.dot(cdf_ref[...], whw_ref[...],
                 precision=lax.Precision.HIGHEST,
                 preferred_element_type=jnp.float32)       # (n_bins*TBC, THW)

    # Per-bin accumulation of the quintic dct2/'reflect' fold.  Reflection
    # terms are added only on the bins where they can be nonzero for
    # gb in [0, n_bins-1] (input normalised to [0, 1]):
    #   low-edge  reflection _bspline5(gb + 1 + b)             only for b <= 1
    #   high-edge reflection _bspline5(gb + 1 + b - 2*n_bins)  only for b >= n_bins-2
    # TODO(synk): inputs outside [0, 1] (true extrapolation) need the full
    # 6-term fold used for the spatial weights in the wrapper.
    acc = None
    for b in range(n_bins):
        w = _bspline5(gb - float(b))
        if b <= 1:
            w = w + _bspline5(gb + (1.0 + b))
        if b >= n_bins - 2:
            w = w + _bspline5(gb + (1.0 + b - 2.0 * n_bins))
        contrib = g2[b * tbc:(b + 1) * tbc, :] * w         # contiguous sublane slice
        acc = contrib if acc is None else acc + contrib
    out_ref[...] = acc                                      # (TBC, THW), lane-dense


# ----------------------------------------------------------------------------
# Tile-size / VMEM-budget helpers
# ----------------------------------------------------------------------------
def _vmem_budget():
    """~3/4 of the queried per-core VMEM, capped at 96 MiB; 48 MiB fallback
    (safe on v7x's 64 MiB)."""
    cap = 64 * 1024 * 1024
    try:
        info = pltpu.get_tpu_info()
        cap = int(getattr(info, "vmem_capacity_bytes", cap))
    except Exception:
        pass
    return min((cap * 3) // 4, 96 * 1024 * 1024)


def _pick_tile(total, quantum, max_tile):
    """Largest divisor of `total` that is a multiple of `quantum` and <= max_tile,
    preferring tiles that give >= 2 grid steps (v7x megacore); falls back to the
    full extent (always a legal Pallas block, possibly lane-masked)."""
    candidates = []
    t = quantum
    limit = min(total, max_tile)
    while t <= limit:
        if total % t == 0:
            candidates.append(t)
        t += quantum
    if not candidates:
        return total
    multi = [t for t in candidates if total // t >= 2]
    return max(multi) if multi else max(candidates)


def _pick_bc_tile(bc, n_bins, max_rows=256):
    """Channels batched per kernel-2 grid step.  Prefer the largest divisor of
    bc that is a multiple of 8 and keeps tbc*n_bins <= max_rows; else the
    smallest multiple-of-8 divisor (bounded VMEM); else full bc (block == full
    dim is always legal)."""
    div8 = [t for t in range(8, bc + 1, 8) if bc % t == 0]
    good = [t for t in div8 if t * n_bins <= max_rows]
    if good:
        return max(good)
    if bc * n_bins <= max_rows:
        return bc
    if div8:
        return min(div8)
    return bc


def _kernel1_tr_cap(vox, n_bins, vmem_budget):
    """Bytes per lane of TR in kernel 1: u8 input block (double-buffered) +
    in-kernel i32/compare transients + f32 output block + per-bin rows."""
    per_tr = 10 * vox + 20 * n_bins + 512
    cap = vmem_budget // per_tr
    return max(128, (cap // 128) * 128)


def _kernel2_thw_cap(tbc, n_bins, n_tiles, vmem_budget):
    """Bytes per lane of THW in kernel 2: x/out blocks + acc/w transients +
    whw block (double-buffered) + the (tbc*n_bins, THW) matmul result."""
    rows = tbc * n_bins
    per_thw = 4 * (rows + 2 * n_tiles + 10 * tbc)
    fixed = 8 * rows * n_tiles + (2 << 20)
    cap = max(0, vmem_budget - fixed) // per_thw
    cap = max(128, (cap // 128) * 128)
    return min(cap, 8192)


# ----------------------------------------------------------------------------
# Wrapper (glue in plain JAX: padding, unfold, weight precompute, final norm)
# ----------------------------------------------------------------------------
def clahe2d_pallas(x, *, clip_limit, n_bins, grid_shape):
    B, C, H, W = x.shape
    GH, GW = grid_shape
    th, tw = int(math.ceil(H / GH)), int(math.ceil(W / GW))
    vox = th * tw
    n_tiles = GH * GW
    pad_h = (GH - H % GH) % GH
    pad_w = (GW - W % GW) % GW
    xp = x
    if pad_h or pad_w:
        xp = jnp.pad(x, ((0, 0), (0, 0), (0, pad_h), (0, pad_w)), mode="reflect")
    Hp, Wp = H + pad_h, W + pad_w

    budget = _vmem_budget()

    # ---- kernel 1: uint8 bin indices, fused unfold+transpose to (vox, R) ----
    R = B * C * n_tiles
    bins = jnp.clip(jnp.floor(xp * n_bins), 0.0, n_bins - 1.0).astype(jnp.uint8)
    bins_T = (bins.reshape(B, C, GH, th, GW, tw)
                  .transpose(3, 5, 0, 1, 2, 4)
                  .reshape(vox, R))                        # (vox, R), R = (B,C,GH,GW)

    TR = _pick_tile(R, 128, _kernel1_tr_cap(vox, n_bins, budget))

    cdf_flat = pl.pallas_call(
        partial(_hist_cdf_kernel, n_bins=n_bins, vox=float(vox),
                clip_limit=float(clip_limit)),
        out_shape=jax.ShapeDtypeStruct((n_bins, R), jnp.float32),
        grid=(R // TR,),
        in_specs=[pl.BlockSpec((vox, TR), lambda i: (0, i))],
        out_specs=pl.BlockSpec((n_bins, TR), lambda i: (0, i)),
        compiler_params=pltpu.CompilerParams(
            dimension_semantics=("parallel",),
            vmem_limit_bytes=budget),
    )(bins_T)

    # ---- data-independent spatial spline weights (tiny, plain JAX) ----------
    coords_h = jnp.linspace(-0.5 - 0.25 / GH, GH - 1 + 0.5 + 0.25 / GH, Hp)[:H]
    coords_w = jnp.linspace(-0.5 - 0.25 / GW, GW - 1 + 0.5 + 0.25 / GW, Wp)[:W]
    wh = _fold_weights(coords_h[:, None], jnp.arange(GH, dtype=jnp.float32)[None, :], GH)  # (H, GH)
    ww = _fold_weights(coords_w[:, None], jnp.arange(GW, dtype=jnp.float32)[None, :], GW)  # (W, GW)
    # TODO(synk): for very large H*W the separable (GH then GW) contraction avoids
    # materialising the (n_tiles, H*W) table entirely.
    whw = jnp.einsum("hj,wk->jkhw", wh, ww).reshape(n_tiles, H * W).astype(jnp.float32)

    # ---- kernel 2: order-5 grid pull, tiled over pixels (outer) x channels ---
    BC, HW = B * C, H * W
    x2 = x.reshape(BC, HW).astype(jnp.float32)
    TBC = _pick_bc_tile(BC, n_bins, max_rows=256)
    THW = _pick_tile(HW, 128, _kernel2_thw_cap(TBC, n_bins, n_tiles, budget))

    # CDF rows: channel-tile-major / bin-major / channel-minor, so each per-bin
    # slab inside a channel-tile block is a contiguous sublane slice.
    cdf2 = (cdf_flat.reshape(n_bins, BC // TBC, TBC, n_tiles)
                    .transpose(1, 0, 2, 3)
                    .reshape(BC * n_bins, n_tiles)).astype(jnp.float32)

    out2 = pl.pallas_call(
        partial(_grid_pull_kernel, n_bins=n_bins, tbc=TBC),
        out_shape=jax.ShapeDtypeStruct((BC, HW), jnp.float32),
        grid=(HW // THW, BC // TBC),          # pixel tiles outer, channel tiles inner
        in_specs=[pl.BlockSpec((TBC, THW), lambda j, i: (i, j)),
                  pl.BlockSpec((n_bins * TBC, n_tiles), lambda j, i: (i, 0)),
                  pl.BlockSpec((n_tiles, THW), lambda j, i: (0, j))],  # whw invariant in i
        out_specs=pl.BlockSpec((TBC, THW), lambda j, i: (i, j)),
        compiler_params=pltpu.CompilerParams(
            dimension_semantics=("parallel", "parallel"),
            vmem_limit_bytes=budget),
    )(x2, cdf2, whw)

    out = out2.reshape(B, C, H, W)
    out = (out - out.min()) / (out.max() - out.min() + 1e-10)
    return out


# ----------------------------------------------------------------------------
# Pure-JAX reference (same math, different code path) for a correctness check
# ----------------------------------------------------------------------------
def clahe2d_reference(x, *, clip_limit, n_bins, grid_shape):
    B, C, H, W = x.shape
    GH, GW = grid_shape
    th, tw = int(math.ceil(H / GH)), int(math.ceil(W / GW))
    vox = th * tw
    pad_h = (GH - H % GH) % GH
    pad_w = (GW - W % GW) % GW
    xp = x
    if pad_h or pad_w:
        xp = jnp.pad(x, ((0, 0), (0, 0), (0, pad_h), (0, pad_w)), mode="reflect")
    Hp, Wp = H + pad_h, W + pad_w

    tiles = (xp.reshape(B, C, GH, th, GW, tw)
               .transpose(0, 1, 2, 4, 3, 5)
               .reshape(B * C * GH * GW, vox))
    idx = jnp.clip(jnp.floor(tiles * n_bins), 0, n_bins - 1).astype(jnp.int32)
    hist = jnp.sum(jax.nn.one_hot(idx, n_bins, dtype=jnp.float32), axis=1)
    pdf = hist / (hist.sum(-1, keepdims=True) + 1e-10)
    histos = pdf * vox
    if clip_limit > 0:
        limit = max(clip_limit * vox // n_bins, 1)
        histos = jnp.minimum(histos, limit)
        clipped = vox - histos.sum(-1, keepdims=True)
        residual = jnp.remainder(clipped, float(n_bins))
        redist = (clipped - residual) / n_bins
        histos = histos + redist + (jnp.arange(n_bins)[None, :] < residual).astype(jnp.float32)
    cdf = jnp.cumsum(histos, -1) * (n_bins - 1.0) / vox
    cdf = jnp.clip(cdf, 0.0, n_bins - 1.0).reshape(B, C, GH, GW, n_bins)

    ch = jnp.linspace(-0.5 - 0.25 / GH, GH - 1 + 0.5 + 0.25 / GH, Hp)[:H]
    cw = jnp.linspace(-0.5 - 0.25 / GW, GW - 1 + 0.5 + 0.25 / GW, Wp)[:W]
    wh = _fold_weights(ch[:, None], jnp.arange(GH, dtype=jnp.float32)[None, :], GH)
    ww = _fold_weights(cw[:, None], jnp.arange(GW, dtype=jnp.float32)[None, :], GW)
    gb = x * (n_bins - 1.0)
    wb = _fold_weights(gb[..., None], jnp.arange(n_bins, dtype=jnp.float32), n_bins)
    out = jnp.einsum("bcjki,bchwi,hj,wk->bchw", cdf, wb, wh, ww,
                     precision=lax.Precision.HIGHEST)
    out = (out - out.min()) / (out.max() - out.min() + 1e-10)
    return out


if __name__ == "__main__":
    # Clahe2D(clip_limit=2.0, n_bins=16, grid_shape=(4, 4), spline_order=5,
    #         spline_bound='reflect', spline_extrapolate=True, diffable=False)
    clip_limit, n_bins, grid_shape = 2.0, 16, (4, 4)

    key = jax.random.PRNGKey(0)
    B, C, H, W = 2, 4, 16, 16
    x = jax.random.uniform(key, (B, C, H, W), dtype=jnp.float32)

    out = clahe2d_pallas(x, clip_limit=clip_limit, n_bins=n_bins, grid_shape=grid_shape)
    out = jax.block_until_ready(out)
    assert out.shape == (B, C, H, W) and out.dtype == jnp.float32

    ref = clahe2d_reference(x, clip_limit=clip_limit, n_bins=n_bins, grid_shape=grid_shape)
    err = float(jnp.max(jnp.abs(out - ref)))
    if err > 5e-4:
        raise AssertionError(f"Pallas output mismatch vs reference, max abs err = {err}")

    print("KERNEL_OK")
</pallas_src>

<mosaic_0001>
module attributes {stable_mosaic.version = 11 : i64} {
  func.func @_hist_cdf_kernel(%arg0: i32, %arg1: memref<16x128xi8, #tpu.memory_space<vmem>>, %arg2: memref<16x128xf32, #tpu.memory_space<vmem>>) attributes {dimension_semantics = [#tpu.dimension_semantics<parallel>], iteration_bounds = array<i64: 1>, scalar_prefetch = 0 : i64, scratch_operands = 0 : i64, tpu.core_type = #tpu.core_type<tc>, window_params = [{transform_indices = @transform_0, window_bounds = array<i64: 16, 128>}, {transform_indices = @transform_1, window_bounds = array<i64: 16, 128>}]} {
    %c0 = arith.constant 0 : index
    %c0_0 = arith.constant 0 : index
    %0 = vector.load %arg1[%c0, %c0_0] : memref<16x128xi8, #tpu.memory_space<vmem>>, vector<16x128xi8>
    %1 = arith.extui %0 : vector<16x128xi8> to vector<16x128xi32>
    %c0_i32 = arith.constant 0 : i32
    %2 = vector.broadcast %c0_i32 : i32 to vector<16x128xi32>
    %3 = arith.cmpi eq, %1, %2 : vector<16x128xi32>
    %4 = arith.extui %3 : vector<16x128xi1> to vector<16x128xi32>
    %5 = arith.sitofp %4 : vector<16x128xi32> to vector<16x128xf32>
    %cst = arith.constant dense<0.000000e+00> : vector<128xf32>
    %6 = vector.multi_reduction <add>, %5, %cst [0] : vector<16x128xf32> to vector<128xf32>
    %7 = vector.shape_cast %6 : vector<128xf32> to vector<1x128xf32>
    %c1_i32 = arith.constant 1 : i32
    %8 = vector.broadcast %c1_i32 : i32 to vector<16x128xi32>
    %9 = arith.cmpi eq, %1, %8 : vector<16x128xi32>
    %10 = arith.extui %9 : vector<16x128xi1> to vector<16x128xi32>
    %11 = arith.sitofp %10 : vector<16x128xi32> to vector<16x128xf32>
    %cst_1 = arith.constant dense<0.000000e+00> : vector<128xf32>
    %12 = vector.multi_reduction <add>, %11, %cst_1 [0] : vector<16x128xf32> to vector<128xf32>
    %13 = vector.shape_cast %12 : vector<128xf32> to vector<1x128xf32>
    %c2_i32 = arith.constant 2 : i32
    %14 = vector.broadcast %c2_i32 : i32 to vector<16x128xi32>
    %15 = arith.cmpi eq, %1, %14 : vector<16x128xi32>
    %16 = arith.extui %15 : vector<16x128xi1> to vector<16x128xi32>
    %17 = arith.sitofp %16 : vector<16x128xi32> to vector<16x128xf32>
    %cst_2 = arith.constant dense<0.000000e+00> : vector<128xf32>
    %18 = vector.multi_reduction <add>, %17, %cst_2 [0] : vector<16x128xf32> to vector<128xf32>
    %19 = vector.shape_cast %18 : vector<128xf32> to vector<1x128xf32>
    %c3_i32 = arith.constant 3 : i32
    %20 = vector.broadcast %c3_i32 : i32 to vector<16x128xi32>
    %21 = arith.cmpi eq, %1, %20 : vector<16x128xi32>
    %22 = arith.extui %21 : vector<16x128xi1> to vector<16x128xi32>
    %23 = arith.sitofp %22 : vector<16x128xi32> to vector<16x128xf32>
    %cst_3 = arith.constant dense<0.000000e+00> : vector<128xf32>
    %24 = vector.multi_reduction <add>, %23, %cst_3 [0] : vector<16x128xf32> to vector<128xf32>
    %25 = vector.shape_cast %24 : vector<128xf32> to vector<1x128xf32>
    %c4_i32 = arith.constant 4 : i32
    %26 = vector.broadcast %c4_i32 : i32 to vector<16x128xi32>
    %27 = arith.cmpi eq, %1, %26 : vector<16x128xi32>
    %28 = arith.extui %27 : vector<16x128xi1> to vector<16x128xi32>
    %29 = arith.sitofp %28 : vector<16x128xi32> to vector<16x128xf32>
    %cst_4 = arith.constant dense<0.000000e+00> : vector<128xf32>
    %30 = vector.multi_reduction <add>, %29, %cst_4 [0] : vector<16x128xf32> to vector<128xf32>
    %31 = vector.shape_cast %30 : vector<128xf32> to vector<1x128xf32>
    %c5_i32 = arith.constant 5 : i32
    %32 = vector.broadcast %c5_i32 : i32 to vector<16x128xi32>
    %33 = arith.cmpi eq, %1, %32 : vector<16x128xi32>
    %34 = arith.extui %33 : vector<16x128xi1> to vector<16x128xi32>
    %35 = arith.sitofp %34 : vector<16x128xi32> to vector<16x128xf32>
    %cst_5 = arith.constant dense<0.000000e+00> : vector<128xf32>
    %36 = vector.multi_reduction <add>, %35, %cst_5 [0] : vector<16x128xf32> to vector<128xf32>
    %37 = vector.shape_cast %36 : vector<128xf32> to vector<1x128xf32>
    %c6_i32 = arith.constant 6 : i32
    %38 = vector.broadcast %c6_i32 : i32 to vector<16x128xi32>
    %39 = arith.cmpi eq, %1, %38 : vector<16x128xi32>
    %40 = arith.extui %39 : vector<16x128xi1> to vector<16x128xi32>
    %41 = arith.sitofp %40 : vector<16x128xi32> to vector<16x128xf32>
    %cst_6 = arith.constant dense<0.000000e+00> : vector<128xf32>
    %42 = vector.multi_reduction <add>, %41, %cst_6 [0] : vector<16x128xf32> to vector<128xf32>
    %43 = vector.shape_cast %42 : vector<128xf32> to vector<1x128xf32>
    %c7_i32 = arith.constant 7 : i32
    %44 = vector.broadcast %c7_i32 : i32 to vector<16x128xi32>
    %45 = arith.cmpi eq, %1, %44 : vector<16x128xi32>
    %46 = arith.extui %45 : vector<16x128xi1> to vector<16x128xi32>
    %47 = arith.sitofp %46 : vector<16x128xi32> to vector<16x128xf32>
    %cst_7 = arith.constant dense<0.000000e+00> : vector<128xf32>
    %48 = vector.multi_reduction <add>, %47, %cst_7 [0] : vector<16x128xf32> to vector<128xf32>
    %49 = vector.shape_cast %48 : vector<128xf32> to vector<1x128xf32>
    %c8_i32 = arith.constant 8 : i32
    %50 = vector.broadcast %c8_i32 : i32 to vector<16x128xi32>
    %51 = arith.cmpi eq, %1, %50 : vector<16x128xi32>
    %52 = arith.extui %51 : vector<16x128xi1> to vector<16x128xi32>
    %53 = arith.sitofp %52 : vector<16x128xi32> to vector<16x128xf32>
    %cst_8 = arith.constant dense<0.000000e+00> : vector<128xf32>
    %54 = vector.multi_reduction <add>, %53, %cst_8 [0] : vector<16x128xf32> to vector<128xf32>
    %55 = vector.shape_cast %54 : vector<128xf32> to vector<1x128xf32>
    %c9_i32 = arith.constant 9 : i32
    %56 = vector.broadcast %c9_i32 : i32 to vector<16x128xi32>
    %57 = arith.cmpi eq, %1, %56 : vector<16x128xi32>
    %58 = arith.extui %57 : vector<16x128xi1> to vector<16x128xi32>
    %59 = arith.sitofp %58 : vector<16x128xi32> to vector<16x128xf32>
    %cst_9 = arith.constant dense<0.000000e+00> : vector<128xf32>
    %60 = vector.multi_reduction <add>, %59, %cst_9 [0] : vector<16x128xf32> to vector<128xf32>
    %61 = vector.shape_cast %60 : vector<128xf32> to vector<1x128xf32>
    %c10_i32 = arith.constant 10 : i32
    %62 = vector.broadcast %c10_i32 : i32 to vector<16x128xi32>
    %63 = arith.cmpi eq, %1, %62 : vector<16x128xi32>
    %64 = arith.extui %63 : vector<16x128xi1> to vector<16x128xi32>
    %65 = arith.sitofp %64 : vector<16x128xi32> to vector<16x128xf32>
    %cst_10 = arith.constant dense<0.000000e+00> : vector<128xf32>
    %66 = vector.multi_reduction <add>, %65, %cst_10 [0] : vector<16x128xf32> to vector<128xf32>
    %67 = vector.shape_cast %66 : vector<128xf32> to vector<1x128xf32>
    %c11_i32 = arith.constant 11 : i32
    %68 = vector.broadcast %c11_i32 : i32 to vector<16x128xi32>
    %69 = arith.cmpi eq, %1, %68 : vector<16x128xi32>
    %70 = arith.extui %69 : vector<16x128xi1> to vector<16x128xi32>
    %71 = arith.sitofp %70 : vector<16x128xi32> to vector<16x128xf32>
    %cst_11 = arith.constant dense<0.000000e+00> : vector<128xf32>
    %72 = vector.multi_reduction <add>, %71, %cst_11 [0] : vector<16x128xf32> to vector<128xf32>
    %73 = vector.shape_cast %72 : vector<128xf32> to vector<1x128xf32>
    %c12_i32 = arith.constant 12 : i32
    %74 = vector.broadcast %c12_i32 : i32 to vector<16x128xi32>
    %75 = arith.cmpi eq, %1, %74 : vector<16x128xi32>
    %76 = arith.extui %75 : vector<16x128xi1> to vector<16x128xi32>
    %77 = arith.sitofp %76 : vector<16x128xi32> to vector<16x128xf32>
    %cst_12 = arith.constant dense<0.000000e+00> : vector<128xf32>
    %78 = vector.multi_reduction <add>, %77, %cst_12 [0] : vector<16x128xf32> to vector<128xf32>
    %79 = vector.shape_cast %78 : vector<128xf32> to vector<1x128xf32>
    %c13_i32 = arith.constant 13 : i32
    %80 = vector.broadcast %c13_i32 : i32 to vector<16x128xi32>
    %81 = arith.cmpi eq, %1, %80 : vector<16x128xi32>
    %82 = arith.extui %81 : vector<16x128xi1> to vector<16x128xi32>
    %83 = arith.sitofp %82 : vector<16x128xi32> to vector<16x128xf32>
    %cst_13 = arith.constant dense<0.000000e+00> : vector<128xf32>
    %84 = vector.multi_reduction <add>, %83, %cst_13 [0] : vector<16x128xf32> to vector<128xf32>
    %85 = vector.shape_cast %84 : vector<128xf32> to vector<1x128xf32>
    %c14_i32 = arith.constant 14 : i32
    %86 = vector.broadcast %c14_i32 : i32 to vector<16x128xi32>
    %87 = arith.cmpi eq, %1, %86 : vector<16x128xi32>
    %88 = arith.extui %87 : vector<16x128xi1> to vector<16x128xi32>
    %89 = arith.sitofp %88 : vector<16x128xi32> to vector<16x128xf32>
    %cst_14 = arith.constant dense<0.000000e+00> : vector<128xf32>
    %90 = vector.multi_reduction <add>, %89, %cst_14 [0] : vector<16x128xf32> to vector<128xf32>
    %91 = vector.shape_cast %90 : vector<128xf32> to vector<1x128xf32>
    %c15_i32 = arith.constant 15 : i32
    %92 = vector.broadcast %c15_i32 : i32 to vector<16x128xi32>
    %93 = arith.cmpi eq, %1, %92 : vector<16x128xi32>
    %94 = arith.extui %93 : vector<16x128xi1> to vector<16x128xi32>
    %95 = arith.sitofp %94 : vector<16x128xi32> to vector<16x128xf32>
    %cst_15 = arith.constant dense<0.000000e+00> : vector<128xf32>
    %96 = vector.multi_reduction <add>, %95, %cst_15 [0] : vector<16x128xf32> to vector<128xf32>
    %97 = vector.shape_cast %96 : vector<128xf32> to vector<1x128xf32>
    %cst_16 = arith.constant 1.000000e+00 : f32
    %98 = vector.broadcast %cst_16 : f32 to vector<1x128xf32>
    %99 = arith.mulf %7, %98 : vector<1x128xf32>
    %cst_17 = arith.constant 1.000000e+00 : f32
    %100 = vector.broadcast %cst_17 : f32 to vector<1x128xf32>
    %101 = arith.mulf %13, %100 : vector<1x128xf32>
    %cst_18 = arith.constant 1.000000e+00 : f32
    %102 = vector.broadcast %cst_18 : f32 to vector<1x128xf32>
    %103 = arith.mulf %19, %102 : vector<1x128xf32>
    %cst_19 = arith.constant 1.000000e+00 : f32
    %104 = vector.broadcast %cst_19 : f32 to vector<1x128xf32>
    %105 = arith.mulf %25, %104 : vector<1x128xf32>
    %cst_20 = arith.constant 1.000000e+00 : f32
    %106 = vector.broadcast %cst_20 : f32 to vector<1x128xf32>
    %107 = arith.mulf %31, %106 : vector<1x128xf32>
    %cst_21 = arith.constant 1.000000e+00 : f32
    %108 = vector.broadcast %cst_21 : f32 to vector<1x128xf32>
    %109 = arith.mulf %37, %108 : vector<1x128xf32>
    %cst_22 = arith.constant 1.000000e+00 : f32
    %110 = vector.broadcast %cst_22 : f32 to vector<1x128xf32>
    %111 = arith.mulf %43, %110 : vector<1x128xf32>
    %cst_23 = arith.constant 1.000000e+00 : f32
    %112 = vector.broadcast %cst_23 : f32 to vector<1x128xf32>
    %113 = arith.mulf %49, %112 : vector<1x128xf32>
    %cst_24 = arith.constant 1.000000e+00 : f32
    %114 = vector.broadcast %cst_24 : f32 to vector<1x128xf32>
    %115 = arith.mulf %55, %114 : vector<1x128xf32>
    %cst_25 = arith.constant 1.000000e+00 : f32
    %116 = vector.broadcast %cst_25 : f32 to vector<1x128xf32>
    %117 = arith.mulf %61, %116 : vector<1x128xf32>
    %cst_26 = arith.constant 1.000000e+00 : f32
    %118 = vector.broadcast %cst_26 : f32 to vector<1x128xf32>
    %119 = arith.mulf %67, %118 : vector<1x128xf32>
    %cst_27 = arith.constant 1.000000e+00 : f32
    %120 = vector.broadcast %cst_27 : f32 to vector<1x128xf32>
    %121 = arith.mulf %73, %120 : vector<1x128xf32>
    %cst_28 = arith.constant 1.000000e+00 : f32
    %122 = vector.broadcast %cst_28 : f32 to vector<1x128xf32>
    %123 = arith.mulf %79, %122 : vector<1x128xf32>
    %cst_29 = arith.constant 1.000000e+00 : f32
    %124 = vector.broadcast %cst_29 : f32 to vector<1x128xf32>
    %125 = arith.mulf %85, %124 : vector<1x128xf32>
    %cst_30 = arith.constant 1.000000e+00 : f32
    %126 = vector.broadcast %cst_30 : f32 to vector<1x128xf32>
    %127 = arith.mulf %91, %126 : vector<1x128xf32>
    %cst_31 = arith.constant 1.000000e+00 : f32
    %128 = vector.broadcast %cst_31 : f32 to vector<1x128xf32>
    %129 = arith.mulf %97, %128 : vector<1x128xf32>
    %cst_32 = arith.constant 2.000000e+00 : f32
    %130 = vector.broadcast %cst_32 : f32 to vector<1x128xf32>
    %131 = arith.minimumf %99, %130 : vector<1x128xf32>
    %cst_33 = arith.constant 2.000000e+00 : f32
    %132 = vector.broadcast %cst_33 : f32 to vector<1x128xf32>
    %133 = arith.minimumf %101, %132 : vector<1x128xf32>
    %134 = arith.addf %131, %133 : vector<1x128xf32>
    %cst_34 = arith.constant 2.000000e+00 : f32
    %135 = vector.broadcast %cst_34 : f32 to vector<1x128xf32>
    %136 = arith.minimumf %103, %135 : vector<1x128xf32>
    %137 = arith.addf %134, %136 : vector<1x128xf32>
    %cst_35 = arith.constant 2.000000e+00 : f32
    %138 = vector.broadcast %cst_35 : f32 to vector<1x128xf32>
    %139 = arith.minimumf %105, %138 : vector<1x128xf32>
    %140 = arith.addf %137, %139 : vector<1x128xf32>
    %cst_36 = arith.constant 2.000000e+00 : f32
    %141 = vector.broadcast %cst_36 : f32 to vector<1x128xf32>
    %142 = arith.minimumf %107, %141 : vector<1x128xf32>
    %143 = arith.addf %140, %142 : vector<1x128xf32>
    %cst_37 = arith.constant 2.000000e+00 : f32
    %144 = vector.broadcast %cst_37 : f32 to vector<1x128xf32>
    %145 = arith.minimumf %109, %144 : vector<1x128xf32>
    %146 = arith.addf %143, %145 : vector<1x128xf32>
    %cst_38 = arith.constant 2.000000e+00 : f32
    %147 = vector.broadcast %cst_38 : f32 to vector<1x128xf32>
    %148 = arith.minimumf %111, %147 : vector<1x128xf32>
    %149 = arith.addf %146, %148 : vector<1x128xf32>
    %cst_39 = arith.constant 2.000000e+00 : f32
    %150 = vector.broadcast %cst_39 : f32 to vector<1x128xf32>
    %151 = arith.minimumf %113, %150 : vector<1x128xf32>
    %152 = arith.addf %149, %151 : vector<1x128xf32>
    %cst_40 = arith.constant 2.000000e+00 : f32
    %153 = vector.broadcast %cst_40 : f32 to vector<1x128xf32>
    %154 = arith.minimumf %115, %153 : vector<1x128xf32>
    %155 = arith.addf %152, %154 : vector<1x128xf32>
    %cst_41 = arith.constant 2.000000e+00 : f32
    %156 = vector.broadcast %cst_41 : f32 to vector<1x128xf32>
    %157 = arith.minimumf %117, %156 : vector<1x128xf32>
    %158 = arith.addf %155, %157 : vector<1x128xf32>
    %cst_42 = arith.constant 2.000000e+00 : f32
    %159 = vector.broadcast %cst_42 : f32 to vector<1x128xf32>
    %160 = arith.minimumf %119, %159 : vector<1x128xf32>
    %161 = arith.addf %158, %160 : vector<1x128xf32>
    %cst_43 = arith.constant 2.000000e+00 : f32
    %162 = vector.broadcast %cst_43 : f32 to vector<1x128xf32>
    %163 = arith.minimumf %121, %162 : vector<1x128xf32>
    %164 = arith.addf %161, %163 : vector<1x128xf32>
    %cst_44 = arith.constant 2.000000e+00 : f32
    %165 = vector.broadcast %cst_44 : f32 to vector<1x128xf32>
    %166 = arith.minimumf %123, %165 : vector<1x128xf32>
    %167 = arith.addf %164, %166 : vector<1x128xf32>
    %cst_45 = arith.constant 2.000000e+00 : f32
    %168 = vector.broadcast %cst_45 : f32 to vector<1x128xf32>
    %169 = arith.minimumf %125, %168 : vector<1x128xf32>
    %170 = arith.addf %167, %169 : vector<1x128xf32>
    %cst_46 = arith.constant 2.000000e+00 : f32
    %171 = vector.broadcast %cst_46 : f32 to vector<1x128xf32>
    %172 = arith.minimumf %127, %171 : vector<1x128xf32>
    %173 = arith.addf %170, %172 : vector<1x128xf32>
    %cst_47 = arith.constant 2.000000e+00 : f32
    %174 = vector.broadcast %cst_47 : f32 to vector<1x128xf32>
    %175 = arith.minimumf %129, %174 : vector<1x128xf32>
    %176 = arith.addf %173, %175 : vector<1x128xf32>
    %cst_48 = arith.constant 1.600000e+01 : f32
    %177 = vector.broadcast %cst_48 : f32 to vector<1x128xf32>
    %178 = arith.subf %177, %176 : vector<1x128xf32>
    %cst_49 = arith.constant 1.600000e+01 : f32
    %179 = vector.broadcast %cst_49 : f32 to vector<1x128xf32>
    %180 = arith.remf %178, %179 : vector<1x128xf32>
    %cst_50 = arith.constant 0.000000e+00 : f32
    %181 = vector.broadcast %cst_50 : f32 to vector<1x128xf32>
    %182 = arith.cmpf one, %180, %181 : vector<1x128xf32>
    %cst_51 = arith.constant 0.000000e+00 : f32
    %183 = vector.broadcast %cst_51 : f32 to vector<1x128xf32>
    %184 = arith.cmpf olt, %180, %183 : vector<1x128xf32>
    %cst_52 = arith.constant 0.000000e+00 : f32
    %185 = arith.cmpf olt, %cst_49, %cst_52 : f32
    %186 = vector.broadcast %185 : i1 to vector<1x128xi1>
    %187 = vector.broadcast %186 : vector<1x128xi1> to vector<1x128xi1>
    %188 = arith.xori %184, %187 : vector<1x128xi1>
    %189 = arith.andi %188, %182 : vector<1x128xi1>
    %190 = vector.broadcast %cst_49 : f32 to vector<1x128xf32>
    %191 = arith.addf %180, %190 : vector<1x128xf32>
    %192 = arith.select %189, %191, %180 : vector<1x128xi1>, vector<1x128xf32>
    %193 = arith.subf %178, %192 : vector<1x128xf32>
    %cst_53 = arith.constant 1.600000e+01 : f32
    %194 = vector.broadcast %cst_53 : f32 to vector<1x128xf32>
    %195 = arith.divf %193, %194 : vector<1x128xf32>
    %196 = arith.addf %131, %195 : vector<1x128xf32>
    %cst_54 = arith.constant 0.000000e+00 : f32
    %197 = vector.broadcast %cst_54 : f32 to vector<1x128xf32>
    %198 = arith.cmpf ogt, %192, %197 : vector<1x128xf32>
    %199 = arith.extui %198 : vector<1x128xi1> to vector<1x128xi32>
    %200 = arith.sitofp %199 : vector<1x128xi32> to vector<1x128xf32>
    %201 = arith.addf %196, %200 : vector<1x128xf32>
    %202 = arith.addf %133, %195 : vector<1x128xf32>
    %cst_55 = arith.constant 1.000000e+00 : f32
    %203 = vector.broadcast %cst_55 : f32 to vector<1x128xf32>
    %204 = arith.cmpf ogt, %192, %203 : vector<1x128xf32>
    %205 = arith.extui %204 : vector<1x128xi1> to vector<1x128xi32>
    %206 = arith.sitofp %205 : vector<1x128xi32> to vector<1x128xf32>
    %207 = arith.addf %202, %206 : vector<1x128xf32>
    %208 = arith.addf %136, %195 : vector<1x128xf32>
    %cst_56 = arith.constant 2.000000e+00 : f32
    %209 = vector.broadcast %cst_56 : f32 to vector<1x128xf32>
    %210 = arith.cmpf ogt, %192, %209 : vector<1x128xf32>
    %211 = arith.extui %210 : vector<1x128xi1> to vector<1x128xi32>
    %212 = arith.sitofp %211 : vector<1x128xi32> to vector<1x128xf32>
    %213 = arith.addf %208, %212 : vector<1x128xf32>
    %214 = arith.addf %139, %195 : vector<1x128xf32>
    %cst_57 = arith.constant 3.000000e+00 : f32
    %215 = vector.broadcast %cst_57 : f32 to vector<1x128xf32>
    %216 = arith.cmpf ogt, %192, %215 : vector<1x128xf32>
    %217 = arith.extui %216 : vector<1x128xi1> to vector<1x128xi32>
    %218 = arith.sitofp %217 : vector<1x128xi32> to vector<1x128xf32>
    %219 = arith.addf %214, %218 : vector<1x128xf32>
    %220 = arith.addf %142, %195 : vector<1x128xf32>
    %cst_58 = arith.constant 4.000000e+00 : f32
    %221 = vector.broadcast %cst_58 : f32 to vector<1x128xf32>
    %222 = arith.cmpf ogt, %192, %221 : vector<1x128xf32>
    %223 = arith.extui %222 : vector<1x128xi1> to vector<1x128xi32>
    %224 = arith.sitofp %223 : vector<1x128xi32> to vector<1x128xf32>
    %225 = arith.addf %220, %224 : vector<1x128xf32>
    %226 = arith.addf %145, %195 : vector<1x128xf32>
    %cst_59 = arith.constant 5.000000e+00 : f32
    %227 = vector.broadcast %cst_59 : f32 to vector<1x128xf32>
    %228 = arith.cmpf ogt, %192, %227 : vector<1x128xf32>
    %229 = arith.extui %228 : vector<1x128xi1> to vector<1x128xi32>
    %230 = arith.sitofp %229 : vector<1x128xi32> to vector<1x128xf32>
    %231 = arith.addf %226, %230 : vector<1x128xf32>
    %232 = arith.addf %148, %195 : vector<1x128xf32>
    %cst_60 = arith.constant 6.000000e+00 : f32
    %233 = vector.broadcast %cst_60 : f32 to vector<1x128xf32>
    %234 = arith.cmpf ogt, %192, %233 : vector<1x128xf32>
    %235 = arith.extui %234 : vector<1x128xi1> to vector<1x128xi32>
    %236 = arith.sitofp %235 : vector<1x128xi32> to vector<1x128xf32>
    %237 = arith.addf %232, %236 : vector<1x128xf32>
    %238 = arith.addf %151, %195 : vector<1x128xf32>
    %cst_61 = arith.constant 7.000000e+00 : f32
    %239 = vector.broadcast %cst_61 : f32 to vector<1x128xf32>
    %240 = arith.cmpf ogt, %192, %239 : vector<1x128xf32>
    %241 = arith.extui %240 : vector<1x128xi1> to vector<1x128xi32>
    %242 = arith.sitofp %241 : vector<1x128xi32> to vector<1x128xf32>
    %243 = arith.addf %238, %242 : vector<1x128xf32>
    %244 = arith.addf %154, %195 : vector<1x128xf32>
    %cst_62 = arith.constant 8.000000e+00 : f32
    %245 = vector.broadcast %cst_62 : f32 to vector<1x128xf32>
    %246 = arith.cmpf ogt, %192, %245 : vector<1x128xf32>
    %247 = arith.extui %246 : vector<1x128xi1> to vector<1x128xi32>
    %248 = arith.sitofp %247 : vector<1x128xi32> to vector<1x128xf32>
    %249 = arith.addf %244, %248 : vector<1x128xf32>
    %250 = arith.addf %157, %195 : vector<1x128xf32>
    %cst_63 = arith.constant 9.000000e+00 : f32
    %251 = vector.broadcast %cst_63 : f32 to vector<1x128xf32>
    %252 = arith.cmpf ogt, %192, %251 : vector<1x128xf32>
    %253 = arith.extui %252 : vector<1x128xi1> to vector<1x128xi32>
    %254 = arith.sitofp %253 : vector<1x128xi32> to vector<1x128xf32>
    %255 = arith.addf %250, %254 : vector<1x128xf32>
    %256 = arith.addf %160, %195 : vector<1x128xf32>
    %cst_64 = arith.constant 1.000000e+01 : f32
    %257 = vector.broadcast %cst_64 : f32 to vector<1x128xf32>
    %258 = arith.cmpf ogt, %192, %257 : vector<1x128xf32>
    %259 = arith.extui %258 : vector<1x128xi1> to vector<1x128xi32>
    %260 = arith.sitofp %259 : vector<1x128xi32> to vector<1x128xf32>
    %261 = arith.addf %256, %260 : vector<1x128xf32>
    %262 = arith.addf %163, %195 : vector<1x128xf32>
    %cst_65 = arith.constant 1.100000e+01 : f32
    %263 = vector.broadcast %cst_65 : f32 to vector<1x128xf32>
    %264 = arith.cmpf ogt, %192, %263 : vector<1x128xf32>
    %265 = arith.extui %264 : vector<1x128xi1> to vector<1x128xi32>
    %266 = arith.sitofp %265 : vector<1x128xi32> to vector<1x128xf32>
    %267 = arith.addf %262, %266 : vector<1x128xf32>
    %268 = arith.addf %166, %195 : vector<1x128xf32>
    %cst_66 = arith.constant 1.200000e+01 : f32
    %269 = vector.broadcast %cst_66 : f32 to vector<1x128xf32>
    %270 = arith.cmpf ogt, %192, %269 : vector<1x128xf32>
    %271 = arith.extui %270 : vector<1x128xi1> to vector<1x128xi32>
    %272 = arith.sitofp %271 : vector<1x128xi32> to vector<1x128xf32>
    %273 = arith.addf %268, %272 : vector<1x128xf32>
    %274 = arith.addf %169, %195 : vector<1x128xf32>
    %cst_67 = arith.constant 1.300000e+01 : f32
    %275 = vector.broadcast %cst_67 : f32 to vector<1x128xf32>
    %276 = arith.cmpf ogt, %192, %275 : vector<1x128xf32>
    %277 = arith.extui %276 : vector<1x128xi1> to vector<1x128xi32>
    %278 = arith.sitofp %277 : vector<1x128xi32> to vector<1x128xf32>
    %279 = arith.addf %274, %278 : vector<1x128xf32>
    %280 = arith.addf %172, %195 : vector<1x128xf32>
    %cst_68 = arith.constant 1.400000e+01 : f32
    %281 = vector.broadcast %cst_68 : f32 to vector<1x128xf32>
    %282 = arith.cmpf ogt, %192, %281 : vector<1x128xf32>
    %283 = arith.extui %282 : vector<1x128xi1> to vector<1x128xi32>
    %284 = arith.sitofp %283 : vector<1x128xi32> to vector<1x128xf32>
    %285 = arith.addf %280, %284 : vector<1x128xf32>
    %286 = arith.addf %175, %195 : vector<1x128xf32>
    %cst_69 = arith.constant 1.500000e+01 : f32
    %287 = vector.broadcast %cst_69 : f32 to vector<1x128xf32>
    %288 = arith.cmpf ogt, %192, %287 : vector<1x128xf32>
    %289 = arith.extui %288 : vector<1x128xi1> to vector<1x128xi32>
    %290 = arith.sitofp %289 : vector<1x128xi32> to vector<1x128xf32>
    %291 = arith.addf %286, %290 : vector<1x128xf32>
    %cst_70 = arith.constant 9.375000e-01 : f32
    %292 = vector.broadcast %cst_70 : f32 to vector<1x128xf32>
    %293 = arith.mulf %201, %292 : vector<1x128xf32>
    %cst_71 = arith.constant 0.000000e+00 : f32
    %cst_72 = arith.constant 1.500000e+01 : f32
    %294 = vector.broadcast %cst_71 : f32 to vector<1x128xf32>
    %295 = arith.maximumf %294, %293 : vector<1x128xf32>
    %296 = vector.broadcast %cst_72 : f32 to vector<1x128xf32>
    %297 = arith.minimumf %296, %295 : vector<1x128xf32>
    %298 = arith.addf %201, %207 : vector<1x128xf32>
    %cst_73 = arith.constant 9.375000e-01 : f32
    %299 = vector.broadcast %cst_73 : f32 to vector<1x128xf32>
    %300 = arith.mulf %298, %299 : vector<1x128xf32>
    %cst_74 = arith.constant 0.000000e+00 : f32
    %cst_75 = arith.constant 1.500000e+01 : f32
    %301 = vector.broadcast %cst_74 : f32 to vector<1x128xf32>
    %302 = arith.maximumf %301, %300 : vector<1x128xf32>
    %303 = vector.broadcast %cst_75 : f32 to vector<1x128xf32>
    %304 = arith.minimumf %303, %302 : vector<1x128xf32>
    %305 = arith.addf %298, %213 : vector<1x128xf32>
    %cst_76 = arith.constant 9.375000e-01 : f32
    %306 = vector.broadcast %cst_76 : f32 to vector<1x128xf32>
    %307 = arith.mulf %305, %306 : vector<1x128xf32>
    %cst_77 = arith.constant 0.000000e+00 : f32
    %cst_78 = arith.constant 1.500000e+01 : f32
    %308 = vector.broadcast %cst_77 : f32 to vector<1x128xf32>
    %309 = arith.maximumf %308, %307 : vector<1x128xf32>
    %310 = vector.broadcast %cst_78 : f32 to vector<1x128xf32>
    %311 = arith.minimumf %310, %309 : vector<1x128xf32>
    %312 = arith.addf %305, %219 : vector<1x128xf32>
    %cst_79 = arith.constant 9.375000e-01 : f32
    %313 = vector.broadcast %cst_79 : f32 to vector<1x128xf32>
    %314 = arith.mulf %312, %313 : vector<1x128xf32>
    %cst_80 = arith.constant 0.000000e+00 : f32
    %cst_81 = arith.constant 1.500000e+01 : f32
    %315 = vector.broadcast %cst_80 : f32 to vector<1x128xf32>
    %316 = arith.maximumf %315, %314 : vector<1x128xf32>
    %317 = vector.broadcast %cst_81 : f32 to vector<1x128xf32>
    %318 = arith.minimumf %317, %316 : vector<1x128xf32>
    %319 = arith.addf %312, %225 : vector<1x128xf32>
    %cst_82 = arith.constant 9.375000e-01 : f32
    %320 = vector.broadcast %cst_82 : f32 to vector<1x128xf32>
    %321 = arith.mulf %319, %320 : vector<1x128xf32>
    %cst_83 = arith.constant 0.000000e+00 : f32
    %cst_84 = arith.constant 1.500000e+01 : f32
    %322 = vector.broadcast %cst_83 : f32 to vector<1x128xf32>
    %323 = arith.maximumf %322, %321 : vector<1x128xf32>
    %324 = vector.broadcast %cst_84 : f32 to vector<1x128xf32>
    %325 = arith.minimumf %324, %323 : vector<1x128xf32>
    %326 = arith.addf %319, %231 : vector<1x128xf32>
    %cst_85 = arith.constant 9.375000e-01 : f32
    %327 = vector.broadcast %cst_85 : f32 to vector<1x128xf32>
    %328 = arith.mulf %326, %327 : vector<1x128xf32>
    %cst_86 = arith.constant 0.000000e+00 : f32
    %cst_87 = arith.constant 1.500000e+01 : f32
    %329 = vector.broadcast %cst_86 : f32 to vector<1x128xf32>
    %330 = arith.maximumf %329, %328 : vector<1x128xf32>
    %331 = vector.broadcast %cst_87 : f32 to vector<1x128xf32>
    %332 = arith.minimumf %331, %330 : vector<1x128xf32>
    %333 = arith.addf %326, %237 : vector<1x128xf32>
    %cst_88 = arith.constant 9.375000e-01 : f32
    %334 = vector.broadcast %cst_88 : f32 to vector<1x128xf32>
    %335 = arith.mulf %333, %334 : vector<1x128xf32>
    %cst_89 = arith.constant 0.000000e+00 : f32
    %cst_90 = arith.constant 1.500000e+01 : f32
    %336 = vector.broadcast %cst_89 : f32 to vector<1x128xf32>
    %337 = arith.maximumf %336, %335 : vector<1x128xf32>
    %338 = vector.broadcast %cst_90 : f32 to vector<1x128xf32>
    %339 = arith.minimumf %338, %337 : vector<1x128xf32>
    %340 = arith.addf %333, %243 : vector<1x128xf32>
    %cst_91 = arith.constant 9.375000e-01 : f32
    %341 = vector.broadcast %cst_91 : f32 to vector<1x128xf32>
    %342 = arith.mulf %340, %341 : vector<1x128xf32>
    %cst_92 = arith.constant 0.000000e+00 : f32
    %cst_93 = arith.constant 1.500000e+01 : f32
    %343 = vector.broadcast %cst_92 : f32 to vector<1x128xf32>
    %344 = arith.maximumf %343, %342 : vector<1x128xf32>
    %345 = vector.broadcast %cst_93 : f32 to vector<1x128xf32>
    %346 = arith.minimumf %345, %344 : vector<1x128xf32>
    %347 = arith.addf %340, %249 : vector<1x128xf32>
    %cst_94 = arith.constant 9.375000e-01 : f32
    %348 = vector.broadcast %cst_94 : f32 to vector<1x128xf32>
    %349 = arith.mulf %347, %348 : vector<1x128xf32>
    %cst_95 = arith.constant 0.000000e+00 : f32
    %cst_96 = arith.constant 1.500000e+01 : f32
    %350 = vector.broadcast %cst_95 : f32 to vector<1x128xf32>
    %351 = arith.maximumf %350, %349 : vector<1x128xf32>
    %352 = vector.broadcast %cst_96 : f32 to vector<1x128xf32>
    %353 = arith.minimumf %352, %351 : vector<1x128xf32>
    %354 = arith.addf %347, %255 : vector<1x128xf32>
    %cst_97 = arith.constant 9.375000e-01 : f32
    %355 = vector.broadcast %cst_97 : f32 to vector<1x128xf32>
    %356 = arith.mulf %354, %355 : vector<1x128xf32>
    %cst_98 = arith.constant 0.000000e+00 : f32
    %cst_99 = arith.constant 1.500000e+01 : f32
    %357 = vector.broadcast %cst_98 : f32 to vector<1x128xf32>
    %358 = arith.maximumf %357, %356 : vector<1x128xf32>
    %359 = vector.broadcast %cst_99 : f32 to vector<1x128xf32>
    %360 = arith.minimumf %359, %358 : vector<1x128xf32>
    %361 = arith.addf %354, %261 : vector<1x128xf32>
    %cst_100 = arith.constant 9.375000e-01 : f32
    %362 = vector.broadcast %cst_100 : f32 to vector<1x128xf32>
    %363 = arith.mulf %361, %362 : vector<1x128xf32>
    %cst_101 = arith.constant 0.000000e+00 : f32
    %cst_102 = arith.constant 1.500000e+01 : f32
    %364 = vector.broadcast %cst_101 : f32 to vector<1x128xf32>
    %365 = arith.maximumf %364, %363 : vector<1x128xf32>
    %366 = vector.broadcast %cst_102 : f32 to vector<1x128xf32>
    %367 = arith.minimumf %366, %365 : vector<1x128xf32>
    %368 = arith.addf %361, %267 : vector<1x128xf32>
    %cst_103 = arith.constant 9.375000e-01 : f32
    %369 = vector.broadcast %cst_103 : f32 to vector<1x128xf32>
    %370 = arith.mulf %368, %369 : vector<1x128xf32>
    %cst_104 = arith.constant 0.000000e+00 : f32
    %cst_105 = arith.constant 1.500000e+01 : f32
    %371 = vector.broadcast %cst_104 : f32 to vector<1x128xf32>
    %372 = arith.maximumf %371, %370 : vector<1x128xf32>
    %373 = vector.broadcast %cst_105 : f32 to vector<1x128xf32>
    %374 = arith.minimumf %373, %372 : vector<1x128xf32>
    %375 = arith.addf %368, %273 : vector<1x128xf32>
    %cst_106 = arith.constant 9.375000e-01 : f32
    %376 = vector.broadcast %cst_106 : f32 to vector<1x128xf32>
    %377 = arith.mulf %375, %376 : vector<1x128xf32>
    %cst_107 = arith.constant 0.000000e+00 : f32
    %cst_108 = arith.constant 1.500000e+01 : f32
    %378 = vector.broadcast %cst_107 : f32 to vector<1x128xf32>
    %379 = arith.maximumf %378, %377 : vector<1x128xf32>
    %380 = vector.broadcast %cst_108 : f32 to vector<1x128xf32>
    %381 = arith.minimumf %380, %379 : vector<1x128xf32>
    %382 = arith.addf %375, %279 : vector<1x128xf32>
    %cst_109 = arith.constant 9.375000e-01 : f32
    %383 = vector.broadcast %cst_109 : f32 to vector<1x128xf32>
    %384 = arith.mulf %382, %383 : vector<1x128xf32>
    %cst_110 = arith.constant 0.000000e+00 : f32
    %cst_111 = arith.constant 1.500000e+01 : f32
    %385 = vector.broadcast %cst_110 : f32 to vector<1x128xf32>
    %386 = arith.maximumf %385, %384 : vector<1x128xf32>
    %387 = vector.broadcast %cst_111 : f32 to vector<1x128xf32>
    %388 = arith.minimumf %387, %386 : vector<1x128xf32>
    %389 = arith.addf %382, %285 : vector<1x128xf32>
    %cst_112 = arith.constant 9.375000e-01 : f32
    %390 = vector.broadcast %cst_112 : f32 to vector<1x128xf32>
    %391 = arith.mulf %389, %390 : vector<1x128xf32>
    %cst_113 = arith.constant 0.000000e+00 : f32
    %cst_114 = arith.constant 1.500000e+01 : f32
    %392 = vector.broadcast %cst_113 : f32 to vector<1x128xf32>
    %393 = arith.maximumf %392, %391 : vector<1x128xf32>
    %394 = vector.broadcast %cst_114 : f32 to vector<1x128xf32>
    %395 = arith.minimumf %394, %393 : vector<1x128xf32>
    %396 = arith.addf %389, %291 : vector<1x128xf32>
    %cst_115 = arith.constant 9.375000e-01 : f32
    %397 = vector.broadcast %cst_115 : f32 to vector<1x128xf32>
    %398 = arith.mulf %396, %397 : vector<1x128xf32>
    %cst_116 = arith.constant 0.000000e+00 : f32
    %cst_117 = arith.constant 1.500000e+01 : f32
    %399 = vector.broadcast %cst_116 : f32 to vector<1x128xf32>
    %400 = arith.maximumf %399, %398 : vector<1x128xf32>
    %401 = vector.broadcast %cst_117 : f32 to vector<1x128xf32>
    %402 = arith.minimumf %401, %400 : vector<1x128xf32>
    %403 = tpu.concatenate %297, %304, %311, %318, %325, %332, %339, %346, %353, %360, %367, %374, %381, %388, %395, %402 in 0 : vector<1x128xf32>, vector<1x128xf32>, vector<1x128xf32>, vector<1x128xf32>, vector<1x128xf32>, vector<1x128xf32>, vector<1x128xf32>, vector<1x128xf32>, vector<1x128xf32>, vector<1x128xf32>, vector<1x128xf32>, vector<1x128xf32>, vector<1x128xf32>, vector<1x128xf32>, vector<1x128xf32>, vector<1x128xf32> -> vector<16x128xf32>
    %c0_118 = arith.constant 0 : index
    %c0_119 = arith.constant 0 : index
    %404 = vector.load %arg2[%c0_118, %c0_119] : memref<16x128xf32, #tpu.memory_space<vmem>>, vector<16x128xf32>
    tpu.vector_store %arg2[%c0_118, %c0_119], %403 {strides = array<i32>} : memref<16x128xf32, #tpu.memory_space<vmem>>, vector<16x128xf32>,
    return
  }
  func.func @transform_0(%arg0: i32) -> (i32, i32) {
    %c0_i32 = arith.constant 0 : i32
    %c0_i32_0 = arith.constant 0 : i32
    return %c0_i32, %arg0 : i32, i32
  }
  func.func @transform_1(%arg0: i32) -> (i32, i32) {
    %c0_i32 = arith.constant 0 : i32
    %c0_i32_0 = arith.constant 0 : i32
    return %c0_i32, %arg0 : i32, i32
  }
}

</mosaic_0001>

<llo_original>
// kernel: tpu_custom_call.1
$region0: #{tpu_custom_call.1}
  #allocation0 [shape = 'u32[]', space=smem, size = 0x4, offset = 0x4, fixed_abs, tag = 'smem constant byte address 0x4 - core index']
  #allocation1 [shape = 'u32[144,128]{1,0:T(1,128)}', space=vmem, size = 0x12000, scoped, tag = 'internal scratch']
  %s0 = inlined_call_operand.hbm [shape: u8[16,128], index: 0, kind: input, shape index: {}]
  %s1 = inlined_call_operand.hbm [shape: f32[16,128], index: 1, kind: output, shape index: {}]
  %s2 = sld [smem:[#allocation0]]
  $region18: #{tpu_custom_call.1} parent=0
    _
  %s4 = ssub.s32 1, %s2
  %s5 = scalar_select 0, %s4, %s2
  $region1: #{tpu_custom_call.1} parent=0
    #allocation2 [shape = 'u8[2048]{0}', space=vmem, size = 0x800, scoped, tag = 'input window, operand 0, single buffered']
    #allocation3 [shape = 's32[1]{0}', space=sflag, size = 0x4, scoped, tag = 'scoped memory for tpu_custom_call.1']
    #allocation4 [shape = 's32[1]{0}', space=sflag, size = 0x4, scoped, tag = 'scoped memory for tpu_custom_call.1']
    #allocation5 [shape = 'u8[8192]{0}', space=vmem, size = 0x2000, scoped, tag = 'output window, operand 0, single buffered']
    %6 = vsyncpa [#allocation3], 0
    %7 = vsyncpa [#allocation4], 0
    // Predicated region
    $region2: #{tpu_custom_call.1} parent=1 // pred_check
      _
    $region3: #{tpu_custom_call.1} parent=1 // pred_check_branch
      %9 = sbr.rel (0) target = $region5
    $region4: #{tpu_custom_call.1} parent=1 // pred_region
      %s11 = ssub.s32 64, 64
      %12 = vsyncadd [#allocation3], %s11
      %s13 = sshll.u32 [#allocation2], 4
      %s14 = int_to_ptr.vmem [resolvable:$true] %s13
      %19 = dma.hbm_to_vmem [thread:$0]  %s0, 64, %s14, [#allocation3], 32, 32, 2
    $region5: #{tpu_custom_call.1} parent=1 // pred_fallthru
      _
    // Predicated region
    $region6: #{tpu_custom_call.1} parent=1 // pred_check
      _
    $region7: #{tpu_custom_call.1} parent=1 // pred_check_branch
      %21 = sbr.rel (0) target = $region9
    $region8: #{tpu_custom_call.1} parent=1 // pred_region
      %22 = dma.done [#allocation3], 64
    $region9: #{tpu_custom_call.1} parent=1 // pred_fallthru
      _
    %v23 = vld [vmem:[#allocation2] sm:$0x3]
    %v24 = vld [vmem:[#allocation2 + $0x2] sm:$0x3]
    %v25 = vunpack.c.0.s8 %v23
    %v26 = vunpack.c.0.s8 %v24
    %v27 = vand.u32 %v25, 255
    %v28 = vand.u32 %v26, 255
    %vm29 = vcmp.eq.s32.totalorder %v27, 0
    %vm30 = vcmp.eq.s32.totalorder %v28, 0
    %v31 = vsel %vm29, 1, 0
    %v32 = vsel %vm30, 1, 0
    %v33 = vcvt.s32.f32 %v31
    %v34 = vcvt.s32.f32 %v32
    %v35 = vadd.f32 %v33, %v34
    %v36 = vrot.slane %v35, 4
    %v37 = vadd.f32 %v35, %v36
    %v38 = vrot.slane %v37, 2
    %v39 = vadd.f32 %v37, %v38
    %v40 = vrot.slane %v39, 1
    %v41 = vadd.f32 %v39, %v40
    %vm42 = vcmp.eq.s32.totalorder %v27, 1
    %vm43 = vcmp.eq.s32.totalorder %v28, 1
    %v44 = vsel %vm42, 1, 0
    %v45 = vsel %vm43, 1, 0
    %v46 = vcvt.s32.f32 %v44
    %v47 = vcvt.s32.f32 %v45
    %v48 = vadd.f32 %v46, %v47
    %v49 = vrot.slane %v48, 4
    %v50 = vadd.f32 %v48, %v49
    %v51 = vrot.slane %v50, 2
    %v52 = vadd.f32 %v50, %v51
    %v53 = vrot.slane %v52, 1
    %v54 = vadd.f32 %v52, %v53
    %vm55 = vcmp.eq.s32.totalorder %v27, 2
    %vm56 = vcmp.eq.s32.totalorder %v28, 2
    %v57 = vsel %vm55, 1, 0
    %v58 = vsel %vm56, 1, 0
    %v59 = vcvt.s32.f32 %v57
    %v60 = vcvt.s32.f32 %v58
    %v61 = vadd.f32 %v59, %v60
    %v62 = vrot.slane %v61, 4
    %v63 = vadd.f32 %v61, %v62
    %v64 = vrot.slane %v63, 2
    %v65 = vadd.f32 %v63, %v64
    %v66 = vrot.slane %v65, 1
    %v67 = vadd.f32 %v65, %v66
    %vm68 = vcmp.eq.s32.totalorder %v27, 3
    %vm69 = vcmp.eq.s32.totalorder %v28, 3
    %v70 = vsel %vm68, 1, 0
    %v71 = vsel %vm69, 1, 0
    %v72 = vcvt.s32.f32 %v70
    %v73 = vcvt.s32.f32 %v71
    %v74 = vadd.f32 %v72, %v73
    %v75 = vrot.slane %v74, 4
    %v76 = vadd.f32 %v74, %v75
    %v77 = vrot.slane %v76, 2
    %v78 = vadd.f32 %v76, %v77
    %v79 = vrot.slane %v78, 1
    %v80 = vadd.f32 %v78, %v79
    %vm81 = vcmp.eq.s32.totalorder %v27, 4
    %vm82 = vcmp.eq.s32.totalorder %v28, 4
    %v83 = vsel %vm81, 1, 0
    %v84 = vsel %vm82, 1, 0
    %v85 = vcvt.s32.f32 %v83
    %v86 = vcvt.s32.f32 %v84
    %v87 = vadd.f32 %v85, %v86
    %v88 = vrot.slane %v87, 4
    %v89 = vadd.f32 %v87, %v88
    %v90 = vrot.slane %v89, 2
    %v91 = vadd.f32 %v89, %v90
    %v92 = vrot.slane %v91, 1
    %v93 = vadd.f32 %v91, %v92
    %vm94 = vcmp.eq.s32.totalorder %v27, 5
    %vm95 = vcmp.eq.s32.totalorder %v28, 5
    %v96 = vsel %vm94, 1, 0
    %v97 = vsel %vm95, 1, 0
    %v98 = vcvt.s32.f32 %v96
    %v99 = vcvt.s32.f32 %v97
    %v100 = vadd.f32 %v98, %v99
    %v101 = vrot.slane %v100, 4
    %v102 = vadd.f32 %v100, %v101
    %v103 = vrot.slane %v102, 2
    %v104 = vadd.f32 %v102, %v103
    %v105 = vrot.slane %v104, 1
    %v106 = vadd.f32 %v104, %v105
    %vm107 = vcmp.eq.s32.totalorder %v27, 6
    %vm108 = vcmp.eq.s32.totalorder %v28, 6
    %v109 = vsel %vm107, 1, 0
    %v110 = vsel %vm108, 1, 0
    %v111 = vcvt.s32.f32 %v109
    %v112 = vcvt.s32.f32 %v110
    %v113 = vadd.f32 %v111, %v112
    %v114 = vrot.slane %v113, 4
    %v115 = vadd.f32 %v113, %v114
    %v116 = vrot.slane %v115, 2
    %v117 = vadd.f32 %v115, %v116
    %v118 = vrot.slane %v117, 1
    %v119 = vadd.f32 %v117, %v118
    %vm120 = vcmp.eq.s32.totalorder %v27, 7
    %vm121 = vcmp.eq.s32.totalorder %v28, 7
    %v122 = vsel %vm120, 1, 0
    %v123 = vsel %vm121, 1, 0
    %v124 = vcvt.s32.f32 %v122
    %v125 = vcvt.s32.f32 %v123
    %v126 = vadd.f32 %v124, %v125
    %v127 = vrot.slane %v126, 4
    %v128 = vadd.f32 %v126, %v127
    %v129 = vrot.slane %v128, 2
    %v130 = vadd.f32 %v128, %v129
    %v131 = vrot.slane %v130, 1
    %v132 = vadd.f32 %v130, %v131
    %vm133 = vcmp.eq.s32.totalorder %v27, 8
    %vm134 = vcmp.eq.s32.totalorder %v28, 8
    %v135 = vsel %vm133, 1, 0
    %v136 = vsel %vm134, 1, 0
    %v137 = vcvt.s32.f32 %v135
    %v138 = vcvt.s32.f32 %v136
    %v139 = vadd.f32 %v137, %v138
    %v140 = vrot.slane %v139, 4
    %v141 = vadd.f32 %v139, %v140
    %v142 = vrot.slane %v141, 2
    %v143 = vadd.f32 %v141, %v142
    %v144 = vrot.slane %v143, 1
    %v145 = vadd.f32 %v143, %v144
    %vm146 = vcmp.eq.s32.totalorder %v27, 9
    %vm147 = vcmp.eq.s32.totalorder %v28, 9
    %v148 = vsel %vm146, 1, 0
    %v149 = vsel %vm147, 1, 0
    %v150 = vcvt.s32.f32 %v148
    %v151 = vcvt.s32.f32 %v149
    %v152 = vadd.f32 %v150, %v151
    %v153 = vrot.slane %v152, 4
    %v154 = vadd.f32 %v152, %v153
    %v155 = vrot.slane %v154, 2
    %v156 = vadd.f32 %v154, %v155
    %v157 = vrot.slane %v156, 1
    %v158 = vadd.f32 %v156, %v157
    %vm159 = vcmp.eq.s32.totalorder %v27, 10
    %vm160 = vcmp.eq.s32.totalorder %v28, 10
    %v161 = vsel %vm159, 1, 0
    %v162 = vsel %vm160, 1, 0
    %v163 = vcvt.s32.f32 %v161
    %v164 = vcvt.s32.f32 %v162
    %v165 = vadd.f32 %v163, %v164
    %v166 = vrot.slane %v165, 4
    %v167 = vadd.f32 %v165, %v166
    %v168 = vrot.slane %v167, 2
    %v169 = vadd.f32 %v167, %v168
    %v170 = vrot.slane %v169, 1
    %v171 = vadd.f32 %v169, %v170
    %vm172 = vcmp.eq.s32.totalorder %v27, 11
    %vm173 = vcmp.eq.s32.totalorder %v28, 11
    %v174 = vsel %vm172, 1, 0
    %v175 = vsel %vm173, 1, 0
    %v176 = vcvt.s32.f32 %v174
    %v177 = vcvt.s32.f32 %v175
    %v178 = vadd.f32 %v176, %v177
    %v179 = vrot.slane %v178, 4
    %v180 = vadd.f32 %v178, %v179
    %v181 = vrot.slane %v180, 2
    %v182 = vadd.f32 %v180, %v181
    %v183 = vrot.slane %v182, 1
    %v184 = vadd.f32 %v182, %v183
    %vm185 = vcmp.eq.s32.totalorder %v27, 12
    %vm186 = vcmp.eq.s32.totalorder %v28, 12
    %v187 = vsel %vm185, 1, 0
    %v188 = vsel %vm186, 1, 0
    %v189 = vcvt.s32.f32 %v187
    %v190 = vcvt.s32.f32 %v188
    %v191 = vadd.f32 %v189, %v190
    %v192 = vrot.slane %v191, 4
    %v193 = vadd.f32 %v191, %v192
    %v194 = vrot.slane %v193, 2
    %v195 = vadd.f32 %v193, %v194
    %v196 = vrot.slane %v195, 1
    %v197 = vadd.f32 %v195, %v196
    %vm198 = vcmp.eq.s32.totalorder %v27, 13
    %vm199 = vcmp.eq.s32.totalorder %v28, 13
    %v200 = vsel %vm198, 1, 0
    %v201 = vsel %vm199, 1, 0
    %v202 = vcvt.s32.f32 %v200
    %v203 = vcvt.s32.f32 %v201
    %v204 = vadd.f32 %v202, %v203
    %v205 = vrot.slane %v204, 4
    %v206 = vadd.f32 %v204, %v205
    %v207 = vrot.slane %v206, 2
    %v208 = vadd.f32 %v206, %v207
    %v209 = vrot.slane %v208, 1
    %v210 = vadd.f32 %v208, %v209
    %vm211 = vcmp.eq.s32.totalorder %v27, 14
    %vm212 = vcmp.eq.s32.totalorder %v28, 14
    %v213 = vsel %vm211, 1, 0
    %v214 = vsel %vm212, 1, 0
    %v215 = vcvt.s32.f32 %v213
    %v216 = vcvt.s32.f32 %v214
    %v217 = vadd.f32 %v215, %v216
    %v218 = vrot.slane %v217, 4
    %v219 = vadd.f32 %v217, %v218
    %v220 = vrot.slane %v219, 2
    %v221 = vadd.f32 %v219, %v220
    %v222 = vrot.slane %v221, 1
    %v223 = vadd.f32 %v221, %v222
    %vm224 = vcmp.eq.s32.totalorder %v27, 15
    %vm225 = vcmp.eq.s32.totalorder %v28, 15
    %v226 = vsel %vm224, 1, 0
    %v227 = vsel %vm225, 1, 0
    %v228 = vcvt.s32.f32 %v226
    %v229 = vcvt.s32.f32 %v227
    %v230 = vadd.f32 %v228, %v229
    %v231 = vrot.slane %v230, 4
    %v232 = vadd.f32 %v230, %v231
    %v233 = vrot.slane %v232, 2
    %v234 = vadd.f32 %v232, %v233
    %v235 = vrot.slane %v234, 1
    %v236 = vadd.f32 %v234, %v235
    %v237 = vmin.f32 %v41, 2.0
    %v238 = vmin.f32 %v54, 2.0
    %v239 = vadd.f32 %v237, %v238
    %v240 = vmin.f32 %v67, 2.0
    %v241 = vadd.f32 %v239, %v240
    %v242 = vmin.f32 %v80, 2.0
    %v243 = vadd.f32 %v241, %v242
    %v244 = vmin.f32 %v93, 2.0
    %v245 = vadd.f32 %v243, %v244
    %v246 = vmin.f32 %v106, 2.0
    %v247 = vadd.f32 %v245, %v246
    %v248 = vmin.f32 %v119, 2.0
    %v249 = vadd.f32 %v247, %v248
    %v250 = vmin.f32 %v132, 2.0
    %v251 = vadd.f32 %v249, %v250
    %v252 = vmin.f32 %v145, 2.0
    %v253 = vadd.f32 %v251, %v252
    %v254 = vmin.f32 %v158, 2.0
    %v255 = vadd.f32 %v253, %v254
    %v256 = vmin.f32 %v171, 2.0
    %v257 = vadd.f32 %v255, %v256
    %v258 = vmin.f32 %v184, 2.0
    %v259 = vadd.f32 %v257, %v258
    %v260 = vmin.f32 %v197, 2.0
    %v261 = vadd.f32 %v259, %v260
    %v262 = vmin.f32 %v210, 2.0
    %v263 = vadd.f32 %v261, %v262
    %v264 = vmin.f32 %v223, 2.0
    %v265 = vadd.f32 %v263, %v264
    %v266 = vmin.f32 %v236, 2.0
    %v267 = vadd.f32 %v265, %v266
    %v268 = vsub.f32 16.0, %v267
    %v269 = vand.u32 2147483647, %v268
    %v270 = vrcp.pop 16.0
    %v271 = vmul.f32 %v269, %v270
    %v272 = vfloor.f32 %v271
    %v273 = vmul.f32 %v272, 16.0
    %v274 = vsub.f32 %v269, %v273
    %vm275 = vcmp.eq.f32.partialorder %v274, 16.0
    %v276 = vsel %vm275, 0.0, %v274
    %v277 = vand.u32 2147483647, %v276
    %v278 = vand.u32 %v268, 2147483648
    %v279 = vor.u32 %v277, %v278
    %vm280 = vcmp.ne.f32.partialorder %v279, 0.0
    %vm281 = vcmp.lt.f32.partialorder %v279, 0.0
    %vm282 = vmand %vm281, %vm280
    %v283 = vadd.f32 %v279, 16.0
    %v284 = vsel %vm282, %v283, %v279
    %v285 = vsub.f32 %v268, %v284
    %v286 = vrcp.pop 16.0
    %v287 = vmul.f32 %v285, %v286
    %v288 = vadd.f32 %v237, %v287
    %vm289 = vcmp.gt.f32.partialorder %v284, 0.0
    %v290 = vsel %vm289, 1, 0
    %v291 = vcvt.s32.f32 %v290
    %v292 = vadd.f32 %v288, %v291
    %v293 = vadd.f32 %v238, %v287
    %vm294 = vcmp.gt.f32.partialorder %v284, 1.0
    %v295 = vsel %vm294, 1, 0
    %v296 = vcvt.s32.f32 %v295
    %v297 = vadd.f32 %v293, %v296
    %v298 = vadd.f32 %v240, %v287
    %vm299 = vcmp.gt.f32.partialorder %v284, 2.0
    %v300 = vsel %vm299, 1, 0
    %v301 = vcvt.s32.f32 %v300
    %v302 = vadd.f32 %v298, %v301
    %v303 = vadd.f32 %v242, %v287
    %vm304 = vcmp.gt.f32.partialorder %v284, 3.0
    %v305 = vsel %vm304, 1, 0
    %v306 = vcvt.s32.f32 %v305
    %v307 = vadd.f32 %v303, %v306
    %v308 = vadd.f32 %v244, %v287
    %vm309 = vcmp.gt.f32.partialorder %v284, 4.0
    %v310 = vsel %vm309, 1, 0
    %v311 = vcvt.s32.f32 %v310
    %v312 = vadd.f32 %v308, %v311
    %v313 = vadd.f32 %v246, %v287
    %vm314 = vcmp.gt.f32.partialorder %v284, 5.0
    %v315 = vsel %vm314, 1, 0
    %v316 = vcvt.s32.f32 %v315
    %v317 = vadd.f32 %v313, %v316
    %v318 = vadd.f32 %v248, %v287
    %vm319 = vcmp.gt.f32.partialorder %v284, 6.0
    %v320 = vsel %vm319, 1, 0
    %v321 = vcvt.s32.f32 %v320
    %v322 = vadd.f32 %v318, %v321
    %v323 = vadd.f32 %v250, %v287
    %vm324 = vcmp.gt.f32.partialorder %v284, 7.0
    %v325 = vsel %vm324, 1, 0
    %v326 = vcvt.s32.f32 %v325
    %v327 = vadd.f32 %v323, %v326
    %v328 = vadd.f32 %v252, %v287
    %vm329 = vcmp.gt.f32.partialorder %v284, 8.0
    %v330 = vsel %vm329, 1, 0
    %v331 = vcvt.s32.f32 %v330
    %v332 = vadd.f32 %v328, %v331
    %v333 = vadd.f32 %v254, %v287
    %vm334 = vcmp.gt.f32.partialorder %v284, 9.0
    %v335 = vsel %vm334, 1, 0
    %v336 = vcvt.s32.f32 %v335
    %v337 = vadd.f32 %v333, %v336
    %v338 = vadd.f32 %v256, %v287
    %vm339 = vcmp.gt.f32.partialorder %v284, 10.0
    %v340 = vsel %vm339, 1, 0
    %v341 = vcvt.s32.f32 %v340
    %v342 = vadd.f32 %v338, %v341
    %v343 = vadd.f32 %v258, %v287
    %vm344 = vcmp.gt.f32.partialorder %v284, 11.0
    %v345 = vsel %vm344, 1, 0
    %v346 = vcvt.s32.f32 %v345
    %v347 = vadd.f32 %v343, %v346
    %v348 = vadd.f32 %v260, %v287
    %vm349 = vcmp.gt.f32.partialorder %v284, 12.0
    %v350 = vsel %vm349, 1, 0
    %v351 = vcvt.s32.f32 %v350
    %v352 = vadd.f32 %v348, %v351
    %v353 = vadd.f32 %v262, %v287
    %vm354 = vcmp.gt.f32.partialorder %v284, 13.0
    %v355 = vsel %vm354, 1, 0
    %v356 = vcvt.s32.f32 %v355
    %v357 = vadd.f32 %v353, %v356
    %v358 = vadd.f32 %v264, %v287
    %vm359 = vcmp.gt.f32.partialorder %v284, 14.0
    %v360 = vsel %vm359, 1, 0
    %v361 = vcvt.s32.f32 %v360
    %v362 = vadd.f32 %v358, %v361
    %v363 = vadd.f32 %v266, %v287
    %vm364 = vcmp.gt.f32.partialorder %v284, 15.0
    %v365 = vsel %vm364, 1, 0
    %v366 = vcvt.s32.f32 %v365
    %v367 = vadd.f32 %v363, %v366
    %v368 = vmul.f32 %v292, 0.9375
    %v369 = vmax.f32 %v368, 0.0
    %v370 = vmin.f32 %v369, 15.0
    %v371 = vadd.f32 %v292, %v297
    %v372 = vmul.f32 %v371, 0.9375
    %v373 = vmax.f32 %v372, 0.0
    %v374 = vmin.f32 %v373, 15.0
    %v375 = vadd.f32 %v371, %v302
    %v376 = vmul.f32 %v375, 0.9375
    %v377 = vmax.f32 %v376, 0.0
    %v378 = vmin.f32 %v377, 15.0
    %v379 = vadd.f32 %v375, %v307
    %v380 = vmul.f32 %v379, 0.9375
    %v381 = vmax.f32 %v380, 0.0
    %v382 = vmin.f32 %v381, 15.0
    %v383 = vadd.f32 %v379, %v312
    %v384 = vmul.f32 %v383, 0.9375
    %v385 = vmax.f32 %v384, 0.0
    %v386 = vmin.f32 %v385, 15.0
    %v387 = vadd.f32 %v383, %v317
    %v388 = vmul.f32 %v387, 0.9375
    %v389 = vmax.f32 %v388, 0.0
    %v390 = vmin.f32 %v389, 15.0
    %v391 = vadd.f32 %v387, %v322
    %v392 = vmul.f32 %v391, 0.9375
    %v393 = vmax.f32 %v392, 0.0
    %v394 = vmin.f32 %v393, 15.0
    %v395 = vadd.f32 %v391, %v327
    %v396 = vmul.f32 %v395, 0.9375
    %v397 = vmax.f32 %v396, 0.0
    %v398 = vmin.f32 %v397, 15.0
    %v399 = vadd.f32 %v395, %v332
    %v400 = vmul.f32 %v399, 0.9375
    %v401 = vmax.f32 %v400, 0.0
    %v402 = vmin.f32 %v401, 15.0
    %v403 = vadd.f32 %v399, %v337
    %v404 = vmul.f32 %v403, 0.9375
    %v405 = vmax.f32 %v404, 0.0
    %v406 = vmin.f32 %v405, 15.0
    %v407 = vadd.f32 %v403, %v342
    %v408 = vmul.f32 %v407, 0.9375
    %v409 = vmax.f32 %v408, 0.0
    %v410 = vmin.f32 %v409, 15.0
    %v411 = vadd.f32 %v407, %v347
    %v412 = vmul.f32 %v411, 0.9375
    %v413 = vmax.f32 %v412, 0.0
    %v414 = vmin.f32 %v413, 15.0
    %v415 = vadd.f32 %v411, %v352
    %v416 = vmul.f32 %v415, 0.9375
    %v417 = vmax.f32 %v416, 0.0
    %v418 = vmin.f32 %v417, 15.0
    %v419 = vadd.f32 %v415, %v357
    %v420 = vmul.f32 %v419, 0.9375
    %v421 = vmax.f32 %v420, 0.0
    %v422 = vmin.f32 %v421, 15.0
    %v423 = vadd.f32 %v419, %v362
    %v424 = vmul.f32 %v423, 0.9375
    %v425 = vmax.f32 %v424, 0.0
    %v426 = vmin.f32 %v425, 15.0
    %v427 = vadd.f32 %v423, %v367
    %v428 = vmul.f32 %v427, 0.9375
    %v429 = vmax.f32 %v428, 0.0
    %v430 = vmin.f32 %v429, 15.0
    %vm431 = vcmask 1040384
    %v432 = vsel %vm431, %v370, %v374
    %vm433 = vcmask 1041408
    %v434 = vsel %vm433, %v432, %v378
    %vm435 = vcmask 1042432
    %v436 = vsel %vm435, %v434, %v382
    %vm437 = vcmask 1043456
    %v438 = vsel %vm437, %v436, %v386
    %vm439 = vcmask 1044480
    %v440 = vsel %vm439, %v438, %v390
    %vm441 = vcmask 1045504
    %v442 = vsel %vm441, %v440, %v394
    %vm443 = vcmask 1046528
    %v444 = vsel %vm443, %v442, %v398
    %v445 = vsel %vm431, %v402, %v406
    %v446 = vsel %vm433, %v445, %v410
    %v447 = vsel %vm435, %v446, %v414
    %v448 = vsel %vm437, %v447, %v418
    %v449 = vsel %vm439, %v448, %v422
    %v450 = vsel %vm441, %v449, %v426
    %v451 = vsel %vm443, %v450, %v430
    %452 = vst [vmem:[#allocation5] sm:$0xff] %v444
    %453 = vst [vmem:[#allocation5 + $0x8] sm:$0xff] %v451
    // Predicated region
    $region10: #{tpu_custom_call.1} parent=1 // pred_check
      _
    $region11: #{tpu_custom_call.1} parent=1 // pred_check_branch
      %455 = sbr.rel (0) target = $region13
    $region12: #{tpu_custom_call.1} parent=1 // pred_region
      %s457 = ssub.s32 256, 256
      %458 = vsyncadd [#allocation4], %s457
      %s459 = sshll.u32 [#allocation5], 4
      %s460 = int_to_ptr.vmem [resolvable:$true] %s459
      %465 = dma.vmem_to_hbm [thread:$0]  %s460, 256, %s1, [#allocation4], 128, 128, 8
    $region13: #{tpu_custom_call.1} parent=1 // pred_fallthru
      _
    // Predicated region
    $region14: #{tpu_custom_call.1} parent=1 // pred_check
      _
    $region15: #{tpu_custom_call.1} parent=1 // pred_check_branch
      %467 = sbr.rel (0) target = $region17
    $region16: #{tpu_custom_call.1} parent=1 // pred_region
      %468 = dma.done [#allocation4], 256
    $region17: #{tpu_custom_call.1} parent=1 // pred_fallthru
      _
    %469 = vsyncpa [#allocation3], 1
    %470 = vsyncpa [#allocation4], 1

</llo_original>
